<compile_context>
chip_gen: v7x
topology: tpu7x:2x2x1
jax: 0.10.0
libtpu: 0.0.40
codegen_flags: <defaults>
</compile_context>

<pallas_src>
import jax
import jax.numpy as jnp
from jax.experimental import pallas as pl
from jax.experimental.pallas import tpu as pltpu


_NEG_BIG = -1e30  # padded-lane logit bias; exp() underflows to exactly 0


def _round_up(n, m):
    return ((n + m - 1) // m) * m


def _head_kernel(x_ref, w1_ref, b1_ref, g_ref, beta_ref,
                 w2_ref, b2_ref, w3_ref, b3_ref, o_ref):
    # x tile arrives f32; cast to bf16 in-register so the wrapper does not
    # spend an HBM pass on the cast (review item 1).
    x = x_ref[...].astype(jnp.bfloat16)

    # Linear 1: [TM, D] @ [D, H] (bf16 operands, f32 MXU accumulation) + bias.
    h = jnp.dot(x, w1_ref[...], preferred_element_type=jnp.float32) + b1_ref[...]

    # LayerNorm over last dim (eps = 1e-5), two-pass variance (numerically
    # robust when |mean| >> std).
    mean = jnp.mean(h, axis=-1, keepdims=True)
    c = h - mean
    var = jnp.mean(c * c, axis=-1, keepdims=True)
    hn = c * jax.lax.rsqrt(var + 1e-5) * g_ref[...] + beta_ref[...]

    # ReLU; Dropout is identity in eval mode.
    # TODO(synk): training-mode dropout (pltpu.prng_*) not implemented.
    hn = jnp.maximum(hn, 0.0)

    # Linear 2: [TM, H] @ [H, H//2] + bias, ReLU.
    h2 = jnp.dot(hn.astype(w2_ref.dtype), w2_ref[...],
                 preferred_element_type=jnp.float32) + b2_ref[...]
    h2 = jnp.maximum(h2, 0.0)

    # Linear 3: [TM, H//2] @ [H//2, A_pad] + bias (padded lanes biased -1e30).
    logits = jnp.dot(h2.astype(w3_ref.dtype), w3_ref[...],
                     preferred_element_type=jnp.float32) + b3_ref[...]

    # Numerically stable softmax over the (padded) asset axis; padded lanes -> 0.
    m = jnp.max(logits, axis=-1, keepdims=True)
    e = jnp.exp(logits - m)
    denom = jnp.sum(e, axis=-1, keepdims=True)
    o_ref[...] = (e * pl.reciprocal(denom, approx=False)).astype(o_ref.dtype)


def portfolio_optimization_head(x, kernel_params, num_assets, *,
                                tm_max=1024, slice_output=True):
    """x: [batch, d_model] float32 -> allocations [batch, num_assets] float32.

    kernel_params: output of `prepare_params` (bf16 weights, lane-padded head).
    With slice_output=False the padded (batch_eff, 128) block is returned
    (padded lanes are exactly 0) so downstream consumers can index lazily and
    skip the extra XLA slice pass.
    """
    w1, b1, gamma, beta, w2, b2, w3p, b3p = kernel_params
    B, D = x.shape
    A_pad = w3p.shape[1]

    # Tiny batches: round up to one 8-row sublane group so the block never
    # exceeds the array.  Larger batches use a partial final block instead of
    # a wrapper-side pad (rows are independent through every op; OOB rows are
    # masked on writeback).
    if B < 8:
        x = jnp.pad(x, ((0, 8 - B), (0, 0)))
    b_eff = max(B, 8)

    assert tm_max >= 8 and tm_max % 8 == 0
    # >= 2 batch tiles whenever possible so v7x's two TensorCores both get
    # work; capped by tm_max so large batches keep big, low-overhead tiles.
    tm = min(tm_max, _round_up(pl.cdiv(b_eff, 2), 8))
    grid = (pl.cdiv(b_eff, tm),)

    def resident(arr):
        # Constant block index -> weight stays VMEM-resident across batch tiles.
        return pl.BlockSpec(arr.shape, lambda i: (0, 0))

    out = pl.pallas_call(
        _head_kernel,
        out_shape=jax.ShapeDtypeStruct((b_eff, A_pad), jnp.float32),
        grid=grid,
        in_specs=[
            pl.BlockSpec((tm, D), lambda i: (i, 0)),
            resident(w1), resident(b1),
            resident(gamma), resident(beta),
            resident(w2), resident(b2),
            resident(w3p), resident(b3p),
        ],
        out_specs=pl.BlockSpec((tm, A_pad), lambda i: (i, 0)),
        compiler_params=pltpu.CompilerParams(
            dimension_semantics=("parallel",),       # megacore split on v7x
            vmem_limit_bytes=32 * 1024 * 1024,       # covers v5e's 16 MiB default
        ),
    )(x, w1, b1, gamma, beta, w2, b2, w3p, b3p)

    if not slice_output:
        return out
    return out[:B, :num_assets]


def init_params(key, d_model, hidden_dim, num_assets):
    """Deterministic synthetic f32 parameters (PyTorch-like uniform ranges)."""
    ks = jax.random.split(key, 6)
    h2 = hidden_dim // 2

    def linear(kw, kb, fan_in, fan_out):
        bound = 1.0 / jnp.sqrt(fan_in)
        w = jax.random.uniform(kw, (fan_in, fan_out), jnp.float32, -bound, bound)
        b = jax.random.uniform(kb, (1, fan_out), jnp.float32, -bound, bound)
        return w, b

    w1, b1 = linear(ks[0], ks[1], d_model, hidden_dim)
    gamma = jnp.ones((1, hidden_dim), jnp.float32)
    beta = jnp.zeros((1, hidden_dim), jnp.float32)
    w2, b2 = linear(ks[2], ks[3], hidden_dim, h2)
    w3, b3 = linear(ks[4], ks[5], h2, num_assets)
    return (w1, b1, gamma, beta, w2, b2, w3, b3)


def prepare_params(params_f32, a_pad=128):
    """f32 params -> kernel params: bf16 matmul weights, head padded to 128 lanes."""
    w1, b1, gamma, beta, w2, b2, w3, b3 = params_f32
    num_assets = w3.shape[1]
    a_pad = max(a_pad, _round_up(num_assets, 128))

    w3p = jnp.zeros((w3.shape[0], a_pad), jnp.float32).at[:, :num_assets].set(w3)
    b3p = jnp.full((1, a_pad), _NEG_BIG, jnp.float32).at[:, :num_assets].set(b3)

    return (w1.astype(jnp.bfloat16), b1, gamma, beta,
            w2.astype(jnp.bfloat16), b2,
            w3p.astype(jnp.bfloat16), b3p)


def _reference_kernel_math(x, kernel_params, num_assets):
    """Pure-JAX reference using the same bf16/f32 math as the kernel."""
    w1, b1, gamma, beta, w2, b2, w3p, b3p = kernel_params
    h = jnp.dot(x.astype(jnp.bfloat16), w1,
                preferred_element_type=jnp.float32) + b1
    mean = jnp.mean(h, -1, keepdims=True)
    c = h - mean
    var = jnp.mean(c * c, -1, keepdims=True)
    hn = c * jax.lax.rsqrt(var + 1e-5) * gamma + beta
    hn = jnp.maximum(hn, 0.0)
    h2 = jnp.maximum(jnp.dot(hn.astype(jnp.bfloat16), w2,
                             preferred_element_type=jnp.float32) + b2, 0.0)
    logits = jnp.dot(h2.astype(jnp.bfloat16), w3p,
                     preferred_element_type=jnp.float32) + b3p
    return jax.nn.softmax(logits, axis=-1)[:, :num_assets]


def _reference_f32(x, params_f32):
    """Full-f32 reference matching the original PyTorch module (eval mode)."""
    w1, b1, gamma, beta, w2, b2, w3, b3 = params_f32
    h = x @ w1 + b1
    mu = h.mean(-1, keepdims=True)
    var = ((h - mu) ** 2).mean(-1, keepdims=True)
    h = (h - mu) / jnp.sqrt(var + 1e-5) * gamma + beta
    h = jnp.maximum(h, 0.0)
    h2 = jnp.maximum(h @ w2 + b2, 0.0)
    logits = h2 @ w3 + b3
    return jax.nn.softmax(logits, axis=-1)


if __name__ == "__main__":
    d_model, hidden_dim, num_assets = 32, 128, 10

    key = jax.random.PRNGKey(0)
    kx, kp, kx2 = jax.random.split(key, 3)

    params = init_params(kp, d_model, hidden_dim, num_assets)
    kparams = prepare_params(params)

    # Small batch (matches the module's [batch, d_model] usage).
    x_small = jax.random.normal(kx, (2, d_model), jnp.float32)
    out_small = jax.block_until_ready(
        portfolio_optimization_head(x_small, kparams, num_assets))
    assert out_small.shape == (2, num_assets)

    # Larger batch: default tiling -> 2 tiles of 152 rows (v7x gets both TCs
    # busy); last tile is a partial block (no wrapper-side padding).
    B = 300
    x_big = jax.random.normal(kx2, (B, d_model), jnp.float32)
    out_big = jax.block_until_ready(
        portfolio_optimization_head(x_big, kparams, num_assets))
    assert out_big.shape == (B, num_assets)

    # Also exercise >2 tiles and the padded (lane-dense) output path.
    out_big_padded = jax.block_until_ready(
        portfolio_optimization_head(x_big, kparams, num_assets,
                                    tm_max=128, slice_output=False))
    assert out_big_padded.shape[1] == 128
    assert jnp.all(out_big_padded[:B, num_assets:] == 0.0)  # padded lanes exact 0
    assert jnp.allclose(out_big_padded[:B, :num_assets], out_big,
                        atol=1e-6, rtol=1e-6)

    for x_in, out in ((x_small, out_small), (x_big, out_big)):
        # Allocations sum to 1 over assets (padded lanes contribute exactly 0).
        assert jnp.allclose(jnp.sum(out, axis=-1), 1.0, atol=1e-4)
        # Tight check vs a reference that mirrors the kernel's bf16 matmul math.
        ref_same = _reference_kernel_math(x_in, kparams, num_assets)
        assert jnp.allclose(out, ref_same, atol=2e-4, rtol=2e-4)
        # Loose check vs the full-f32 PyTorch-equivalent reference
        # (difference is only bf16 rounding of the matmul operands).
        ref_f32 = _reference_f32(x_in, params)
        assert jnp.allclose(out, ref_f32, atol=2e-2)

    print("KERNEL_OK")
</pallas_src>

<mosaic_0001>
module attributes {stable_mosaic.version = 11 : i64} {
  func.func @_head_kernel(%arg0: i32, %arg1: memref<8x32xf32, #tpu.memory_space<vmem>>, %arg2: memref<32x128xbf16, #tpu.memory_space<vmem>>, %arg3: memref<1x128xf32, #tpu.memory_space<vmem>>, %arg4: memref<1x128xf32, #tpu.memory_space<vmem>>, %arg5: memref<1x128xf32, #tpu.memory_space<vmem>>, %arg6: memref<128x64xbf16, #tpu.memory_space<vmem>>, %arg7: memref<1x64xf32, #tpu.memory_space<vmem>>, %arg8: memref<64x128xbf16, #tpu.memory_space<vmem>>, %arg9: memref<1x128xf32, #tpu.memory_space<vmem>>, %arg10: memref<8x128xf32, #tpu.memory_space<vmem>>) attributes {dimension_semantics = [#tpu.dimension_semantics<parallel>], iteration_bounds = array<i64: 1>, scalar_prefetch = 0 : i64, scratch_operands = 0 : i64, tpu.core_type = #tpu.core_type<tc>, window_params = [{transform_indices = @transform_0, window_bounds = array<i64: 8, 32>}, {pipeline_mode = #tpu.pipeline_mode<synchronous>, transform_indices = @transform_1, window_bounds = array<i64: 32, 128>}, {pipeline_mode = #tpu.pipeline_mode<synchronous>, transform_indices = @transform_2, window_bounds = array<i64: 1, 128>}, {pipeline_mode = #tpu.pipeline_mode<synchronous>, transform_indices = @transform_3, window_bounds = array<i64: 1, 128>}, {pipeline_mode = #tpu.pipeline_mode<synchronous>, transform_indices = @transform_4, window_bounds = array<i64: 1, 128>}, {pipeline_mode = #tpu.pipeline_mode<synchronous>, transform_indices = @transform_5, window_bounds = array<i64: 128, 64>}, {pipeline_mode = #tpu.pipeline_mode<synchronous>, transform_indices = @transform_6, window_bounds = array<i64: 1, 64>}, {pipeline_mode = #tpu.pipeline_mode<synchronous>, transform_indices = @transform_7, window_bounds = array<i64: 64, 128>}, {pipeline_mode = #tpu.pipeline_mode<synchronous>, transform_indices = @transform_8, window_bounds = array<i64: 1, 128>}, {transform_indices = @transform_9, window_bounds = array<i64: 8, 128>}]} {
    %c0 = arith.constant 0 : index
    %c0_0 = arith.constant 0 : index
    %0 = vector.load %arg1[%c0, %c0_0] : memref<8x32xf32, #tpu.memory_space<vmem>>, vector<8x32xf32>
    %1 = arith.truncf %0 : vector<8x32xf32> to vector<8x32xbf16>
    %c0_1 = arith.constant 0 : index
    %c0_2 = arith.constant 0 : index
    %2 = vector.load %arg2[%c0_1, %c0_2] : memref<32x128xbf16, #tpu.memory_space<vmem>>, vector<32x128xbf16>
    %cst = arith.constant dense<0.000000e+00> : vector<8x128xf32>
    %3 = tpu.matmul %1, %2, %cst {dimension_numbers = #tpu.dot_dimension_numbers<[1], [0], [0], [1], [0, 0, 1, 1], [], []>} : vector<8x32xbf16>, vector<32x128xbf16>, vector<8x128xf32> -> vector<8x128xf32>
    %c0_3 = arith.constant 0 : index
    %c0_4 = arith.constant 0 : index
    %4 = vector.load %arg3[%c0_3, %c0_4] : memref<1x128xf32, #tpu.memory_space<vmem>>, vector<1x128xf32>
    %5 = vector.broadcast %4 : vector<1x128xf32> to vector<8x128xf32>
    %6 = arith.addf %3, %5 : vector<8x128xf32>
    %cst_5 = arith.constant dense<0.000000e+00> : vector<8xf32>
    %7 = vector.multi_reduction <add>, %6, %cst_5 [1] : vector<8x128xf32> to vector<8xf32>
    %8 = vector.shape_cast %7 : vector<8xf32> to vector<8x1xf32>
    %cst_6 = arith.constant 1.280000e+02 : f32
    %9 = vector.broadcast %cst_6 : f32 to vector<8x1xf32>
    %10 = arith.divf %8, %9 : vector<8x1xf32>
    %11 = vector.broadcast %10 : vector<8x1xf32> to vector<8x128xf32>
    %12 = arith.subf %6, %11 : vector<8x128xf32>
    %13 = arith.mulf %12, %12 : vector<8x128xf32>
    %cst_7 = arith.constant dense<0.000000e+00> : vector<8xf32>
    %14 = vector.multi_reduction <add>, %13, %cst_7 [1] : vector<8x128xf32> to vector<8xf32>
    %15 = vector.shape_cast %14 : vector<8xf32> to vector<8x1xf32>
    %cst_8 = arith.constant 1.280000e+02 : f32
    %16 = vector.broadcast %cst_8 : f32 to vector<8x1xf32>
    %17 = arith.divf %15, %16 : vector<8x1xf32>
    %cst_9 = arith.constant 9.99999974E-6 : f32
    %18 = vector.broadcast %cst_9 : f32 to vector<8x1xf32>
    %19 = arith.addf %17, %18 : vector<8x1xf32>
    %20 = math.rsqrt %19 : vector<8x1xf32>
    %21 = vector.broadcast %20 : vector<8x1xf32> to vector<8x128xf32>
    %22 = arith.mulf %12, %21 : vector<8x128xf32>
    %c0_10 = arith.constant 0 : index
    %c0_11 = arith.constant 0 : index
    %23 = vector.load %arg4[%c0_10, %c0_11] : memref<1x128xf32, #tpu.memory_space<vmem>>, vector<1x128xf32>
    %24 = vector.broadcast %23 : vector<1x128xf32> to vector<8x128xf32>
    %25 = arith.mulf %22, %24 : vector<8x128xf32>
    %c0_12 = arith.constant 0 : index
    %c0_13 = arith.constant 0 : index
    %26 = vector.load %arg5[%c0_12, %c0_13] : memref<1x128xf32, #tpu.memory_space<vmem>>, vector<1x128xf32>
    %27 = vector.broadcast %26 : vector<1x128xf32> to vector<8x128xf32>
    %28 = arith.addf %25, %27 : vector<8x128xf32>
    %cst_14 = arith.constant 0.000000e+00 : f32
    %29 = vector.broadcast %cst_14 : f32 to vector<8x128xf32>
    %30 = arith.maximumf %28, %29 : vector<8x128xf32>
    %31 = arith.truncf %30 : vector<8x128xf32> to vector<8x128xbf16>
    %c0_15 = arith.constant 0 : index
    %c0_16 = arith.constant 0 : index
    %32 = vector.load %arg6[%c0_15, %c0_16] : memref<128x64xbf16, #tpu.memory_space<vmem>>, vector<128x64xbf16>
    %cst_17 = arith.constant dense<0.000000e+00> : vector<8x64xf32>
    %33 = tpu.matmul %31, %32, %cst_17 {dimension_numbers = #tpu.dot_dimension_numbers<[1], [0], [0], [1], [0, 0, 1, 1], [], []>} : vector<8x128xbf16>, vector<128x64xbf16>, vector<8x64xf32> -> vector<8x64xf32>
    %c0_18 = arith.constant 0 : index
    %c0_19 = arith.constant 0 : index
    %34 = vector.load %arg7[%c0_18, %c0_19] : memref<1x64xf32, #tpu.memory_space<vmem>>, vector<1x64xf32>
    %35 = vector.broadcast %34 : vector<1x64xf32> to vector<8x64xf32>
    %36 = arith.addf %33, %35 : vector<8x64xf32>
    %cst_20 = arith.constant 0.000000e+00 : f32
    %37 = vector.broadcast %cst_20 : f32 to vector<8x64xf32>
    %38 = arith.maximumf %36, %37 : vector<8x64xf32>
    %39 = arith.truncf %38 : vector<8x64xf32> to vector<8x64xbf16>
    %c0_21 = arith.constant 0 : index
    %c0_22 = arith.constant 0 : index
    %40 = vector.load %arg8[%c0_21, %c0_22] : memref<64x128xbf16, #tpu.memory_space<vmem>>, vector<64x128xbf16>
    %cst_23 = arith.constant dense<0.000000e+00> : vector<8x128xf32>
    %41 = tpu.matmul %39, %40, %cst_23 {dimension_numbers = #tpu.dot_dimension_numbers<[1], [0], [0], [1], [0, 0, 1, 1], [], []>} : vector<8x64xbf16>, vector<64x128xbf16>, vector<8x128xf32> -> vector<8x128xf32>
    %c0_24 = arith.constant 0 : index
    %c0_25 = arith.constant 0 : index
    %42 = vector.load %arg9[%c0_24, %c0_25] : memref<1x128xf32, #tpu.memory_space<vmem>>, vector<1x128xf32>
    %43 = vector.broadcast %42 : vector<1x128xf32> to vector<8x128xf32>
    %44 = arith.addf %41, %43 : vector<8x128xf32>
    %cst_26 = arith.constant dense<0xFF800000> : vector<8xf32>
    %45 = vector.multi_reduction <maximumf>, %44, %cst_26 [1] : vector<8x128xf32> to vector<8xf32>
    %46 = vector.shape_cast %45 : vector<8xf32> to vector<8x1xf32>
    %47 = vector.broadcast %46 : vector<8x1xf32> to vector<8x128xf32>
    %48 = arith.subf %44, %47 : vector<8x128xf32>
    %49 = math.exp %48 : vector<8x128xf32>
    %cst_27 = arith.constant dense<0.000000e+00> : vector<8xf32>
    %50 = vector.multi_reduction <add>, %49, %cst_27 [1] : vector<8x128xf32> to vector<8xf32>
    %51 = vector.shape_cast %50 : vector<8xf32> to vector<8x1xf32>
    %52 = tpu.reciprocal %51 : vector<8x1xf32> -> vector<8x1xf32>
    %53 = vector.broadcast %52 : vector<8x1xf32> to vector<8x128xf32>
    %54 = arith.mulf %49, %53 : vector<8x128xf32>
    %c0_28 = arith.constant 0 : index
    %c0_29 = arith.constant 0 : index
    %55 = vector.load %arg10[%c0_28, %c0_29] : memref<8x128xf32, #tpu.memory_space<vmem>>, vector<8x128xf32>
    tpu.vector_store %arg10[%c0_28, %c0_29], %54 {strides = array<i32>} : memref<8x128xf32, #tpu.memory_space<vmem>>, vector<8x128xf32>,
    return
  }
  func.func @transform_0(%arg0: i32) -> (i32, i32) {
    %c0_i32 = arith.constant 0 : i32
    %c0_i32_0 = arith.constant 0 : i32
    return %arg0, %c0_i32 : i32, i32
  }
  func.func @transform_1(%arg0: i32) -> (i32, i32) {
    %c0_i32 = arith.constant 0 : i32
    %c0_i32_0 = arith.constant 0 : i32
    %c0_i32_1 = arith.constant 0 : i32
    return %c0_i32, %c0_i32_0 : i32, i32
  }
  func.func @transform_2(%arg0: i32) -> (i32, i32) {
    %c0_i32 = arith.constant 0 : i32
    %c0_i32_0 = arith.constant 0 : i32
    %c0_i32_1 = arith.constant 0 : i32
    return %c0_i32, %c0_i32_0 : i32, i32
  }
  func.func @transform_3(%arg0: i32) -> (i32, i32) {
    %c0_i32 = arith.constant 0 : i32
    %c0_i32_0 = arith.constant 0 : i32
    %c0_i32_1 = arith.constant 0 : i32
    return %c0_i32, %c0_i32_0 : i32, i32
  }
  func.func @transform_4(%arg0: i32) -> (i32, i32) {
    %c0_i32 = arith.constant 0 : i32
    %c0_i32_0 = arith.constant 0 : i32
    %c0_i32_1 = arith.constant 0 : i32
    return %c0_i32, %c0_i32_0 : i32, i32
  }
  func.func @transform_5(%arg0: i32) -> (i32, i32) {
    %c0_i32 = arith.constant 0 : i32
    %c0_i32_0 = arith.constant 0 : i32
    %c0_i32_1 = arith.constant 0 : i32
    return %c0_i32, %c0_i32_0 : i32, i32
  }
  func.func @transform_6(%arg0: i32) -> (i32, i32) {
    %c0_i32 = arith.constant 0 : i32
    %c0_i32_0 = arith.constant 0 : i32
    %c0_i32_1 = arith.constant 0 : i32
    return %c0_i32, %c0_i32_0 : i32, i32
  }
  func.func @transform_7(%arg0: i32) -> (i32, i32) {
    %c0_i32 = arith.constant 0 : i32
    %c0_i32_0 = arith.constant 0 : i32
    %c0_i32_1 = arith.constant 0 : i32
    return %c0_i32, %c0_i32_0 : i32, i32
  }
  func.func @transform_8(%arg0: i32) -> (i32, i32) {
    %c0_i32 = arith.constant 0 : i32
    %c0_i32_0 = arith.constant 0 : i32
    %c0_i32_1 = arith.constant 0 : i32
    return %c0_i32, %c0_i32_0 : i32, i32
  }
  func.func @transform_9(%arg0: i32) -> (i32, i32) {
    %c0_i32 = arith.constant 0 : i32
    %c0_i32_0 = arith.constant 0 : i32
    return %arg0, %c0_i32 : i32, i32
  }
}

</mosaic_0001>

<llo_original>
// kernel: tpu_custom_call.1
$region0: #{tpu_custom_call.1}
  #allocation0 [shape = 'u32[]', space=smem, size = 0x4, offset = 0x4, fixed_abs, tag = 'smem constant byte address 0x4 - core index']
  #allocation1 [shape = 'u32[144,128]{1,0:T(1,128)}', space=vmem, size = 0x12000, scoped, tag = 'internal scratch']
  %s0 = inlined_call_operand.vmem [shape: f32[8,32], index: 0, kind: input, shape index: {}]
  %s1 = inlined_call_operand.vmem [shape: bf16[32,128], index: 1, kind: input, shape index: {}]
  %s2 = inlined_call_operand.vmem [shape: f32[1,128], index: 2, kind: input, shape index: {}]
  %s3 = inlined_call_operand.vmem [shape: f32[1,128], index: 3, kind: input, shape index: {}]
  %s4 = inlined_call_operand.vmem [shape: f32[1,128], index: 4, kind: input, shape index: {}]
  %s5 = inlined_call_operand.vmem [shape: bf16[128,64], index: 5, kind: input, shape index: {}]
  %s6 = inlined_call_operand.vmem [shape: f32[1,64], index: 6, kind: input, shape index: {}]
  %s7 = inlined_call_operand.vmem [shape: bf16[64,128], index: 7, kind: input, shape index: {}]
  %s8 = inlined_call_operand.vmem [shape: f32[1,128], index: 8, kind: input, shape index: {}]
  %s9 = inlined_call_operand.hbm [shape: f32[8,128], index: 9, kind: output, shape index: {}]
  %s10 = sld [smem:[#allocation0]]
  $region46: #{tpu_custom_call.1} parent=0
    _
  %s12 = ssub.s32 1, %s10
  %s13 = scalar_select 0, %s12, %s10
  $region1: #{tpu_custom_call.1} parent=0
    #allocation2 [shape = 'u8[4096]{0}', space=vmem, size = 0x1000, scoped, tag = 'output window, operand 0, single buffered']
    #allocation3 [shape = 's32[1]{0}', space=sflag, size = 0x4, scoped, tag = 'scoped memory for tpu_custom_call.1']
    %14 = vsyncpa [#allocation3], 0
    // Predicated region
    $region2: #{tpu_custom_call.1} parent=1 // pred_check
      _
    $region3: #{tpu_custom_call.1} parent=1 // pred_check_branch
      %16 = sbr.rel (0) target = $region5
    $region4: #{tpu_custom_call.1} parent=1 // pred_region
      _
    $region5: #{tpu_custom_call.1} parent=1 // pred_fallthru
      _
    // Predicated region
    $region6: #{tpu_custom_call.1} parent=1 // pred_check
      _
    $region7: #{tpu_custom_call.1} parent=1 // pred_check_branch
      %18 = sbr.rel (0) target = $region9
    $region8: #{tpu_custom_call.1} parent=1 // pred_region
      _
    $region9: #{tpu_custom_call.1} parent=1 // pred_fallthru
      _
    // Predicated region
    $region10: #{tpu_custom_call.1} parent=1 // pred_check
      _
    $region11: #{tpu_custom_call.1} parent=1 // pred_check_branch
      %20 = sbr.rel (0) target = $region13
    $region12: #{tpu_custom_call.1} parent=1 // pred_region
      _
    $region13: #{tpu_custom_call.1} parent=1 // pred_fallthru
      _
    // Predicated region
    $region14: #{tpu_custom_call.1} parent=1 // pred_check
      _
    $region15: #{tpu_custom_call.1} parent=1 // pred_check_branch
      %22 = sbr.rel (0) target = $region17
    $region16: #{tpu_custom_call.1} parent=1 // pred_region
      _
    $region17: #{tpu_custom_call.1} parent=1 // pred_fallthru
      _
    // Predicated region
    $region18: #{tpu_custom_call.1} parent=1 // pred_check
      _
    $region19: #{tpu_custom_call.1} parent=1 // pred_check_branch
      %24 = sbr.rel (0) target = $region21
    $region20: #{tpu_custom_call.1} parent=1 // pred_region
      _
    $region21: #{tpu_custom_call.1} parent=1 // pred_fallthru
      _
    // Predicated region
    $region22: #{tpu_custom_call.1} parent=1 // pred_check
      _
    $region23: #{tpu_custom_call.1} parent=1 // pred_check_branch
      %26 = sbr.rel (0) target = $region25
    $region24: #{tpu_custom_call.1} parent=1 // pred_region
      _
    $region25: #{tpu_custom_call.1} parent=1 // pred_fallthru
      _
    // Predicated region
    $region26: #{tpu_custom_call.1} parent=1 // pred_check
      _
    $region27: #{tpu_custom_call.1} parent=1 // pred_check_branch
      %28 = sbr.rel (0) target = $region29
    $region28: #{tpu_custom_call.1} parent=1 // pred_region
      _
    $region29: #{tpu_custom_call.1} parent=1 // pred_fallthru
      _
    // Predicated region
    $region30: #{tpu_custom_call.1} parent=1 // pred_check
      _
    $region31: #{tpu_custom_call.1} parent=1 // pred_check_branch
      %30 = sbr.rel (0) target = $region33
    $region32: #{tpu_custom_call.1} parent=1 // pred_region
      _
    $region33: #{tpu_custom_call.1} parent=1 // pred_fallthru
      _
    // Predicated region
    $region34: #{tpu_custom_call.1} parent=1 // pred_check
      _
    $region35: #{tpu_custom_call.1} parent=1 // pred_check_branch
      %32 = sbr.rel (0) target = $region37
    $region36: #{tpu_custom_call.1} parent=1 // pred_region
      _
    $region37: #{tpu_custom_call.1} parent=1 // pred_fallthru
      _
    %v34 = vld [vmem:[%s0] sm:$0xff]
    %v35 = vpack.c.bf16 %v34, %v34
    %v36 = vld [vmem:[%s1] sm:$0xf]
    %v37 = vld [vmem:[%s1 + $0x4] sm:$0xf]
    %v38 = vld [vmem:[%s1 + $0x8] sm:$0xf]
    %v39 = vld [vmem:[%s1 + $0xc] sm:$0xf]
    %v40 = vld [vmem:[%s2] sm:$0x1]
    %v42 = vlaneseq
    %v43 = vshrl.u32 %v42, 7
    %v44 = vsub.s32 0, %v43
    %v45 = vrot.slane %v40, %v44
    %v51 = vunpack.c.l.b16 %v36
    %v52 = vunpack.c.l.b16 %v37
    %v53 = vunpack.c.l.b16 %v38
    %v54 = vunpack.c.l.b16 %v39
    %v55 = vpack.c.b16 %v52, %v51
    %v56 = vpack.c.b16 %v54, %v53
    %vm59 = vcmask 261120
    %v61 = vsel %vm59, %v35, 0
    %63 = vmatprep.subr.bf16.mxu0 0
    %64 = vmatpush1.bf16.msra.mxu0 %v55
    %65 = vmatprep.subr.bf16.mxu0 0
    %66 = vmatpush1.bf16.msra.mxu0 %v56
    %67 = vmatprep.subr.bf16.mxu0 0
    %68 = vmatpush1.bf16.msra.mxu0 0
    %69 = vmatprep.subr.bf16.mxu0 0
    %70 = vmatpush1.bf16.msra.mxu0 0
    %71 = vmatprep.subr.bf16.mxu0 0
    %72 = vmatpush1.bf16.msra.mxu0 0
    %73 = vmatprep.subr.bf16.mxu0 0
    %74 = vmatpush1.bf16.msra.mxu0 0
    %75 = vmatprep.subr.bf16.mxu0 0
    %76 = vmatpush1.bf16.msra.mxu0 0
    %77 = vmatprep.subr.bf16.mxu0 0
    %78 = vmatpush1.bf16.msra.mxu0 0
    %79 = vmatprep.subr.bf16.mxu0 0
    %80 = vmatpush1.bf16.msra.mxu0 0
    %81 = vmatprep.subr.bf16.mxu0 0
    %82 = vmatpush1.bf16.msra.mxu0 0
    %83 = vmatprep.subr.bf16.mxu0 0
    %84 = vmatpush1.bf16.msra.mxu0 0
    %85 = vmatprep.subr.bf16.mxu0 0
    %86 = vmatpush1.bf16.msra.mxu0 0
    %87 = vmatprep.subr.bf16.mxu0 0
    %88 = vmatpush1.bf16.msra.mxu0 0
    %89 = vmatprep.subr.bf16.mxu0 0
    %90 = vmatpush1.bf16.msra.mxu0 0
    %91 = vmatprep.subr.bf16.mxu0 0
    %92 = vmatpush1.bf16.msra.mxu0 0
    %93 = vmatprep.subr.bf16.mxu0 0
    %94 = vmatpush1.bf16.msra.mxu0 0
    %95 = vmatprep.mubr.bf16.mxu0 0
    %96 = vmatmul.mubr.bf16.gmra.mrb[0].mxu0 %v61
    %v97 = vpop.f32.mrb[0].mxu0
    %v98 = vadd.f32 %v45, %v97
    %v99 = vpop.f32.mrb[0].mxu0
    %v100 = vpop.f32.mrb[0].mxu0
    %v101 = vpop.f32.mrb[0].mxu0
    %102 = vdwg.mxu0
    %103 = vadd.xlane.f32.xlu0 %v98
    %v104 = vpop.xlane.xlu0 %103
    %v105 = vrcp.pop 128.0
    %v106 = vmul.f32 %v104, %v105
    %v107 = vsub.f32 %v98, %v106
    %v108 = vmul.f32 %v107, %v107
    %109 = vadd.xlane.f32.xlu0 %v108
    %v110 = vpop.xlane.xlu0 %109
    %v111 = vmul.f32 %v110, %v105
    %v112 = vadd.f32 %v111, 1e-05
    %v113 = vrsqrt.pop %v112
    %v114 = vmul.f32 %v107, %v113
    %v115 = vld [vmem:[%s3] sm:$0x1]
    %v117 = vlaneseq
    %v118 = vshrl.u32 %v117, 7
    %v119 = vsub.s32 0, %v118
    %v120 = vrot.slane %v115, %v119
    %v122 = vmul.f32 %v114, %v120
    %v123 = vld [vmem:[%s4] sm:$0x1]
    %v125 = vlaneseq
    %v126 = vshrl.u32 %v125, 7
    %v127 = vsub.s32 0, %v126
    %v128 = vrot.slane %v123, %v127
    %v130 = vadd.f32 %v122, %v128
    %v131 = vmax.f32 %v130, 0.0
    %v132 = vpack.c.bf16 %v131, %v131
    %v133 = vld [vmem:[%s5] sm:$0xf]
    %v134 = vld [vmem:[%s5 + $0x4] sm:$0xf]
    %v135 = vld [vmem:[%s5 + $0x8] sm:$0xf]
    %v136 = vld [vmem:[%s5 + $0xc] sm:$0xf]
    %v137 = vld [vmem:[%s5 + $0x10] sm:$0xf]
    %v138 = vld [vmem:[%s5 + $0x14] sm:$0xf]
    %v139 = vld [vmem:[%s5 + $0x18] sm:$0xf]
    %v140 = vld [vmem:[%s5 + $0x1c] sm:$0xf]
    %v141 = vld [vmem:[%s5 + $0x20] sm:$0xf]
    %v142 = vld [vmem:[%s5 + $0x24] sm:$0xf]
    %v143 = vld [vmem:[%s5 + $0x28] sm:$0xf]
    %v144 = vld [vmem:[%s5 + $0x2c] sm:$0xf]
    %v145 = vld [vmem:[%s5 + $0x30] sm:$0xf]
    %v146 = vld [vmem:[%s5 + $0x34] sm:$0xf]
    %v147 = vld [vmem:[%s5 + $0x38] sm:$0xf]
    %v148 = vld [vmem:[%s5 + $0x3c] sm:$0xf]
    %v149 = vld [vmem:[%s6] sm:$0x1]
    %v151 = vlaneseq
    %v152 = vshrl.u32 %v151, 7
    %v153 = vsub.s32 0, %v152
    %v154 = vrot.slane %v149, %v153
    %v172 = vunpack.c.l.b16 %v133
    %v173 = vunpack.c.l.b16 %v134
    %v174 = vunpack.c.l.b16 %v135
    %v175 = vunpack.c.l.b16 %v136
    %v176 = vunpack.c.l.b16 %v137
    %v177 = vunpack.c.l.b16 %v138
    %v178 = vunpack.c.l.b16 %v139
    %v179 = vunpack.c.l.b16 %v140
    %v180 = vunpack.c.l.b16 %v141
    %v181 = vunpack.c.l.b16 %v142
    %v182 = vunpack.c.l.b16 %v143
    %v183 = vunpack.c.l.b16 %v144
    %v184 = vunpack.c.l.b16 %v145
    %v185 = vunpack.c.l.b16 %v146
    %v186 = vunpack.c.l.b16 %v147
    %v187 = vunpack.c.l.b16 %v148
    %v188 = vpack.c.b16 %v173, %v172
    %v189 = vpack.c.b16 %v175, %v174
    %v190 = vpack.c.b16 %v177, %v176
    %v191 = vpack.c.b16 %v179, %v178
    %v192 = vpack.c.b16 %v181, %v180
    %v193 = vpack.c.b16 %v183, %v182
    %v194 = vpack.c.b16 %v185, %v184
    %v195 = vpack.c.b16 %v187, %v186
    %204 = vmatprep.subr.bf16.mxu0 0
    %205 = vmatpush1.bf16.msra.mxu0 %v188
    %206 = vmatprep.subr.bf16.mxu0 0
    %207 = vmatpush1.bf16.msra.mxu0 %v189
    %208 = vmatprep.subr.bf16.mxu0 0
    %209 = vmatpush1.bf16.msra.mxu0 %v190
    %210 = vmatprep.subr.bf16.mxu0 0
    %211 = vmatpush1.bf16.msra.mxu0 %v191
    %212 = vmatprep.subr.bf16.mxu0 0
    %213 = vmatpush1.bf16.msra.mxu0 %v192
    %214 = vmatprep.subr.bf16.mxu0 0
    %215 = vmatpush1.bf16.msra.mxu0 %v193
    %216 = vmatprep.subr.bf16.mxu0 0
    %217 = vmatpush1.bf16.msra.mxu0 %v194
    %218 = vmatprep.subr.bf16.mxu0 0
    %219 = vmatpush1.bf16.msra.mxu0 %v195
    %220 = vmatprep.subr.bf16.mxu0 0
    %221 = vmatpush1.bf16.msra.mxu0 0
    %222 = vmatprep.subr.bf16.mxu0 0
    %223 = vmatpush1.bf16.msra.mxu0 0
    %224 = vmatprep.subr.bf16.mxu0 0
    %225 = vmatpush1.bf16.msra.mxu0 0
    %226 = vmatprep.subr.bf16.mxu0 0
    %227 = vmatpush1.bf16.msra.mxu0 0
    %228 = vmatprep.subr.bf16.mxu0 0
    %229 = vmatpush1.bf16.msra.mxu0 0
    %230 = vmatprep.subr.bf16.mxu0 0
    %231 = vmatpush1.bf16.msra.mxu0 0
    %232 = vmatprep.subr.bf16.mxu0 0
    %233 = vmatpush1.bf16.msra.mxu0 0
    %234 = vmatprep.subr.bf16.mxu0 0
    %235 = vmatpush1.bf16.msra.mxu0 0
    %236 = vmatprep.mubr.bf16.mxu0 0
    %237 = vmatmul.mubr.bf16.gmra.mrb[0].mxu0 %v132
    %v238 = vpop.f32.mrb[0].mxu0
    %v239 = vadd.f32 %v154, %v238
    %v240 = vpop.f32.mrb[0].mxu0
    %v241 = vpop.f32.mrb[0].mxu0
    %v242 = vpop.f32.mrb[0].mxu0
    %243 = vdwg.mxu0
    %v244 = vmax.f32 %v239, 0.0
    %v245 = vpack.c.bf16 %v244, %v244
    %v246 = vld [vmem:[%s7] sm:$0xf]
    %v247 = vld [vmem:[%s7 + $0x4] sm:$0xf]
    %v248 = vld [vmem:[%s7 + $0x8] sm:$0xf]
    %v249 = vld [vmem:[%s7 + $0xc] sm:$0xf]
    %v250 = vld [vmem:[%s7 + $0x10] sm:$0xf]
    %v251 = vld [vmem:[%s7 + $0x14] sm:$0xf]
    %v252 = vld [vmem:[%s7 + $0x18] sm:$0xf]
    %v253 = vld [vmem:[%s7 + $0x1c] sm:$0xf]
    %v254 = vld [vmem:[%s8] sm:$0x1]
    %v256 = vlaneseq
    %v257 = vshrl.u32 %v256, 7
    %v258 = vsub.s32 0, %v257
    %v259 = vrot.slane %v254, %v258
    %v269 = vunpack.c.l.b16 %v246
    %v270 = vunpack.c.l.b16 %v247
    %v271 = vunpack.c.l.b16 %v248
    %v272 = vunpack.c.l.b16 %v249
    %v273 = vunpack.c.l.b16 %v250
    %v274 = vunpack.c.l.b16 %v251
    %v275 = vunpack.c.l.b16 %v252
    %v276 = vunpack.c.l.b16 %v253
    %v277 = vpack.c.b16 %v270, %v269
    %v278 = vpack.c.b16 %v272, %v271
    %v279 = vpack.c.b16 %v274, %v273
    %v280 = vpack.c.b16 %v276, %v275
    %vm285 = vcmask 523264
    %v287 = vsel %vm285, %v245, 0
    %289 = vmatprep.subr.bf16.mxu0 0
    %290 = vmatpush1.bf16.msra.mxu0 %v277
    %291 = vmatprep.subr.bf16.mxu0 0
    %292 = vmatpush1.bf16.msra.mxu0 %v278
    %293 = vmatprep.subr.bf16.mxu0 0
    %294 = vmatpush1.bf16.msra.mxu0 %v279
    %295 = vmatprep.subr.bf16.mxu0 0
    %296 = vmatpush1.bf16.msra.mxu0 %v280
    %297 = vmatprep.subr.bf16.mxu0 0
    %298 = vmatpush1.bf16.msra.mxu0 0
    %299 = vmatprep.subr.bf16.mxu0 0
    %300 = vmatpush1.bf16.msra.mxu0 0
    %301 = vmatprep.subr.bf16.mxu0 0
    %302 = vmatpush1.bf16.msra.mxu0 0
    %303 = vmatprep.subr.bf16.mxu0 0
    %304 = vmatpush1.bf16.msra.mxu0 0
    %305 = vmatprep.subr.bf16.mxu0 0
    %306 = vmatpush1.bf16.msra.mxu0 0
    %307 = vmatprep.subr.bf16.mxu0 0
    %308 = vmatpush1.bf16.msra.mxu0 0
    %309 = vmatprep.subr.bf16.mxu0 0
    %310 = vmatpush1.bf16.msra.mxu0 0
    %311 = vmatprep.subr.bf16.mxu0 0
    %312 = vmatpush1.bf16.msra.mxu0 0
    %313 = vmatprep.subr.bf16.mxu0 0
    %314 = vmatpush1.bf16.msra.mxu0 0
    %315 = vmatprep.subr.bf16.mxu0 0
    %316 = vmatpush1.bf16.msra.mxu0 0
    %317 = vmatprep.subr.bf16.mxu0 0
    %318 = vmatpush1.bf16.msra.mxu0 0
    %319 = vmatprep.subr.bf16.mxu0 0
    %320 = vmatpush1.bf16.msra.mxu0 0
    %321 = vmatprep.mubr.bf16.mxu0 0
    %322 = vmatmul.mubr.bf16.gmra.mrb[0].mxu0 %v287
    %v323 = vpop.f32.mrb[0].mxu0
    %v324 = vadd.f32 %v259, %v323
    %v325 = vpop.f32.mrb[0].mxu0
    %v326 = vpop.f32.mrb[0].mxu0
    %v327 = vpop.f32.mrb[0].mxu0
    %328 = vdwg.mxu0
    %329 = vmax.xlane.f32.xlu0 %v324
    %v330 = vpop.xlane.xlu0 %329
    %v331 = vsub.f32 %v324, %v330
    %v332 = vmul.f32 %v331, 1.442695
    %v333 = vpow.pop %v332
    %334 = vadd.xlane.f32.xlu0 %v333
    %v335 = vpop.xlane.xlu0 %334
    %v336 = vrcp.pop %v335
    %v337 = vmul.f32 %v333, %v336
    %338 = vst [vmem:[#allocation2] sm:$0xff] %v337
    // Predicated region
    $region38: #{tpu_custom_call.1} parent=1 // pred_check
      _
    $region39: #{tpu_custom_call.1} parent=1 // pred_check_branch
      %340 = sbr.rel (0) target = $region41
    $region40: #{tpu_custom_call.1} parent=1 // pred_region
      %s342 = ssub.s32 128, 128
      %343 = vsyncadd [#allocation3], %s342
      %s345 = sshll.u32 [#allocation2], 4
      %s346 = int_to_ptr.vmem [resolvable:$true] %s345
      %348 = dma.vmem_to_hbm [thread:$0]  %s346, 128, %s9, [#allocation3]
    $region41: #{tpu_custom_call.1} parent=1 // pred_fallthru
      _
    // Predicated region
    $region42: #{tpu_custom_call.1} parent=1 // pred_check
      _
    $region43: #{tpu_custom_call.1} parent=1 // pred_check_branch
      %350 = sbr.rel (0) target = $region45
    $region44: #{tpu_custom_call.1} parent=1 // pred_region
      %351 = dma.done [#allocation3], 128
    $region45: #{tpu_custom_call.1} parent=1 // pred_fallthru
      _
    %352 = vsyncpa [#allocation3], 1

</llo_original>
